<compile_context>
chip_gen: v7x
topology: tpu7x:2x2x1
jax: 0.10.0
libtpu: 0.0.40
codegen_flags: <defaults>
</compile_context>

<pallas_src>
import jax
import jax.numpy as jnp
from jax.experimental import pallas as pl
from jax.experimental.pallas import tpu as pltpu


def _round_up(n, m):
    return ((n + m - 1) // m) * m


def _choose_batch_tile(B, block_b):
    """Pick a batch tile: multiple of 8 sublanes, <= block_b, >= 2 tiles when possible."""
    block_b = max(8, _round_up(block_b, 8))
    if B <= 8:
        # Single block equal to the full (tiny) batch; a block equal to the
        # full dim is layout-legal even when B % 8 != 0.
        return B
    # Keep at least two tiles so both v7x TensorCores get work.
    half = _round_up(pl.cdiv(B, 2), 8)
    return max(8, min(block_b, half))


def _dqn_kernel(x_ref, w1_ref, b1_ref, w2_ref, b2_ref, o_ref):
    # fc1: (tb, S) @ (S, H) + (1, H) -> ReLU, f32 accumulation on the MXU.
    h = jnp.dot(x_ref[...], w1_ref[...], preferred_element_type=jnp.float32)
    h = jnp.maximum(h + b1_ref[...], 0.0)
    # fc2: (tb, H) @ (H, A) + (1, A). Output stays compact (A=2) so the HBM
    # writeback is tiny instead of a 512 B/row zero-padded slab.
    q = jnp.dot(h.astype(w2_ref.dtype), w2_ref[...],
                preferred_element_type=jnp.float32)
    o_ref[...] = (q + b2_ref[...]).astype(o_ref.dtype)


def dqn_forward(x, w1, b1, w2, b2, *, block_b=4096, compute_dtype=jnp.bfloat16):
    """x: (B, S); w1: (S, H); b1: (1, H); w2: (H, A); b2: (1, A) -> (B, A) f32."""
    B, S = x.shape
    H = w1.shape[1]
    A = w2.shape[1]

    # Matmul operands in compute_dtype (bf16 halves the x input stream);
    # biases and accumulation stay f32.  When calling repeatedly, cast the
    # weights once at init time so these casts constant-fold / are no-ops.
    x_c = x.astype(compute_dtype)
    w1_c = w1.astype(compute_dtype)
    w2_c = w2.astype(compute_dtype)
    b1_c = b1.astype(jnp.float32)
    b2_c = b2.astype(jnp.float32)

    tb = _choose_batch_tile(B, block_b)
    grid = (pl.cdiv(B, tb),)  # ragged last block; no wrapper-side jnp.pad

    itemsize = jnp.dtype(compute_dtype).itemsize
    flops = 2 * B * (S * H + H * A)
    bytes_accessed = (B * S * itemsize + B * A * 4
                      + (S * H + H * A) * itemsize + (H + A) * 4)

    # Rough VMEM footprint: double-buffered x/out tiles + f32 intermediates
    # + resident weights.  Only raise the scoped-VMEM limit when it matters
    # (v5e's default is 16 MiB; v6e/v7x default to 32 MiB).
    vmem_est = (2 * tb * S * itemsize          # x tile, double-buffered
                + 2 * tb * A * 4               # out tile, double-buffered
                + tb * H * 4 + tb * A * 4      # h / q intermediates (f32)
                + 2 * ((S * H + H * A) * itemsize + (H + A) * 4))
    compiler_kwargs = dict(dimension_semantics=("parallel",))
    if vmem_est > 14 * 1024 * 1024:
        compiler_kwargs["vmem_limit_bytes"] = min(2 * vmem_est, 100 * 1024 * 1024)

    return pl.pallas_call(
        _dqn_kernel,
        out_shape=jax.ShapeDtypeStruct((B, A), jnp.float32),
        grid=grid,
        in_specs=[
            pl.BlockSpec((tb, S), lambda i: (i, 0)),   # x: streamed per batch tile
            pl.BlockSpec((S, H), lambda i: (0, 0)),    # W1: VMEM-resident across grid
            pl.BlockSpec((1, H), lambda i: (0, 0)),    # b1: resident
            pl.BlockSpec((H, A), lambda i: (0, 0)),    # W2: resident (compact A=2)
            pl.BlockSpec((1, A), lambda i: (0, 0)),    # b2: resident
        ],
        out_specs=pl.BlockSpec((tb, A), lambda i: (i, 0)),
        compiler_params=pltpu.CompilerParams(**compiler_kwargs),
        cost_estimate=pl.CostEstimate(
            flops=flops, transcendentals=0, bytes_accessed=bytes_accessed),
    )(x_c, w1_c, b1_c, w2_c, b2_c)


def init_params(key, state_size=100, hidden=128, action_size=2):
    """Deterministic init mimicking nn.Linear's uniform(-1/sqrt(fan_in), 1/sqrt(fan_in))."""
    k1, k2, k3, k4 = jax.random.split(key, 4)
    bound1 = 1.0 / jnp.sqrt(jnp.float32(state_size))
    bound2 = 1.0 / jnp.sqrt(jnp.float32(hidden))
    # Stored already transposed: (in, out)
    w1 = jax.random.uniform(k1, (state_size, hidden), jnp.float32, -bound1, bound1)
    b1 = jax.random.uniform(k2, (1, hidden), jnp.float32, -bound1, bound1)
    w2 = jax.random.uniform(k3, (hidden, action_size), jnp.float32, -bound2, bound2)
    b2 = jax.random.uniform(k4, (1, action_size), jnp.float32, -bound2, bound2)
    return w1, b1, w2, b2


def _ref_forward(x, w1, b1, w2, b2, dt):
    h = jnp.maximum(
        jnp.dot(x.astype(dt), w1.astype(dt),
                preferred_element_type=jnp.float32) + b1, 0.0)
    return jnp.dot(h.astype(dt), w2.astype(dt),
                   preferred_element_type=jnp.float32) + b2


if __name__ == "__main__":
    key = jax.random.PRNGKey(0)
    kp, kx = jax.random.split(key)

    state_size, hidden, action_size = 100, 128, 2
    batch = 2

    w1, b1, w2, b2 = init_params(kp, state_size, hidden, action_size)

    # One-hot encoded learner positions on the 10x10 grid.
    pos = jax.random.randint(kx, (batch,), 0, state_size)
    x = jax.nn.one_hot(pos, state_size, dtype=jnp.float32)  # (2, 100)

    # Default path: bf16 matmul operands, f32 accumulation.
    q_vals = jax.block_until_ready(dqn_forward(x, w1, b1, w2, b2))
    assert q_vals.shape == (batch, action_size)
    assert jnp.allclose(q_vals, _ref_forward(x, w1, b1, w2, b2, jnp.bfloat16),
                        atol=1e-3, rtol=1e-3)
    assert jnp.allclose(q_vals, _ref_forward(x, w1, b1, w2, b2, jnp.float32),
                        atol=5e-2, rtol=5e-2)

    # Exact-f32 path matches the PyTorch module's numerics tightly.
    q_f32 = jax.block_until_ready(
        dqn_forward(x, w1, b1, w2, b2, compute_dtype=jnp.float32))
    assert jnp.allclose(q_f32, _ref_forward(x, w1, b1, w2, b2, jnp.float32),
                        atol=1e-3, rtol=1e-3)

    # Multi-tile + ragged-final-block path (grid of 3, partial last tile).
    pos_b = jax.random.randint(kx, (20,), 0, state_size)
    xb = jax.nn.one_hot(pos_b, state_size, dtype=jnp.float32)
    q_big = jax.block_until_ready(dqn_forward(xb, w1, b1, w2, b2, block_b=8))
    assert q_big.shape == (20, action_size)
    assert jnp.allclose(q_big, _ref_forward(xb, w1, b1, w2, b2, jnp.bfloat16),
                        atol=1e-3, rtol=1e-3)

    print("KERNEL_OK")
</pallas_src>

<mosaic_0001>
module attributes {stable_mosaic.version = 11 : i64} {
  func.func @_dqn_kernel(%arg0: i32, %arg1: memref<2x100xbf16, #tpu.memory_space<vmem>>, %arg2: memref<100x128xbf16, #tpu.memory_space<vmem>>, %arg3: memref<1x128xf32, #tpu.memory_space<vmem>>, %arg4: memref<128x2xbf16, #tpu.memory_space<vmem>>, %arg5: memref<1x2xf32, #tpu.memory_space<vmem>>, %arg6: memref<2x2xf32, #tpu.memory_space<vmem>>) attributes {dimension_semantics = [#tpu.dimension_semantics<parallel>], iteration_bounds = array<i64: 1>, scalar_prefetch = 0 : i64, scratch_operands = 0 : i64, tpu.core_type = #tpu.core_type<tc>, window_params = [{transform_indices = @transform_0, window_bounds = array<i64: 2, 100>}, {pipeline_mode = #tpu.pipeline_mode<synchronous>, transform_indices = @transform_1, window_bounds = array<i64: 100, 128>}, {pipeline_mode = #tpu.pipeline_mode<synchronous>, transform_indices = @transform_2, window_bounds = array<i64: 1, 128>}, {pipeline_mode = #tpu.pipeline_mode<synchronous>, transform_indices = @transform_3, window_bounds = array<i64: 128, 2>}, {pipeline_mode = #tpu.pipeline_mode<synchronous>, transform_indices = @transform_4, window_bounds = array<i64: 1, 2>}, {transform_indices = @transform_5, window_bounds = array<i64: 2, 2>}]} {
    %c0 = arith.constant 0 : index
    %c0_0 = arith.constant 0 : index
    %0 = vector.load %arg1[%c0, %c0_0] : memref<2x100xbf16, #tpu.memory_space<vmem>>, vector<2x100xbf16>
    %c0_1 = arith.constant 0 : index
    %c0_2 = arith.constant 0 : index
    %1 = vector.load %arg2[%c0_1, %c0_2] : memref<100x128xbf16, #tpu.memory_space<vmem>>, vector<100x128xbf16>
    %cst = arith.constant dense<0.000000e+00> : vector<2x128xf32>
    %2 = tpu.matmul %0, %1, %cst {dimension_numbers = #tpu.dot_dimension_numbers<[1], [0], [0], [1], [0, 0, 1, 1], [], []>} : vector<2x100xbf16>, vector<100x128xbf16>, vector<2x128xf32> -> vector<2x128xf32>
    %c0_3 = arith.constant 0 : index
    %c0_4 = arith.constant 0 : index
    %3 = vector.load %arg3[%c0_3, %c0_4] : memref<1x128xf32, #tpu.memory_space<vmem>>, vector<1x128xf32>
    %4 = vector.broadcast %3 : vector<1x128xf32> to vector<2x128xf32>
    %5 = arith.addf %2, %4 : vector<2x128xf32>
    %cst_5 = arith.constant 0.000000e+00 : f32
    %6 = vector.broadcast %cst_5 : f32 to vector<2x128xf32>
    %7 = arith.maximumf %5, %6 : vector<2x128xf32>
    %8 = arith.truncf %7 : vector<2x128xf32> to vector<2x128xbf16>
    %c0_6 = arith.constant 0 : index
    %c0_7 = arith.constant 0 : index
    %9 = vector.load %arg4[%c0_6, %c0_7] : memref<128x2xbf16, #tpu.memory_space<vmem>>, vector<128x2xbf16>
    %cst_8 = arith.constant dense<0.000000e+00> : vector<2x2xf32>
    %10 = tpu.matmul %8, %9, %cst_8 {dimension_numbers = #tpu.dot_dimension_numbers<[1], [0], [0], [1], [0, 0, 1, 1], [], []>} : vector<2x128xbf16>, vector<128x2xbf16>, vector<2x2xf32> -> vector<2x2xf32>
    %c0_9 = arith.constant 0 : index
    %c0_10 = arith.constant 0 : index
    %11 = vector.load %arg5[%c0_9, %c0_10] : memref<1x2xf32, #tpu.memory_space<vmem>>, vector<1x2xf32>
    %12 = vector.broadcast %11 : vector<1x2xf32> to vector<2x2xf32>
    %13 = arith.addf %10, %12 : vector<2x2xf32>
    %c0_11 = arith.constant 0 : index
    %c0_12 = arith.constant 0 : index
    %14 = vector.load %arg6[%c0_11, %c0_12] : memref<2x2xf32, #tpu.memory_space<vmem>>, vector<2x2xf32>
    tpu.vector_store %arg6[%c0_11, %c0_12], %13 {strides = array<i32>} : memref<2x2xf32, #tpu.memory_space<vmem>>, vector<2x2xf32>,
    return
  }
  func.func @transform_0(%arg0: i32) -> (i32, i32) {
    %c0_i32 = arith.constant 0 : i32
    %c0_i32_0 = arith.constant 0 : i32
    return %arg0, %c0_i32 : i32, i32
  }
  func.func @transform_1(%arg0: i32) -> (i32, i32) {
    %c0_i32 = arith.constant 0 : i32
    %c0_i32_0 = arith.constant 0 : i32
    %c0_i32_1 = arith.constant 0 : i32
    return %c0_i32, %c0_i32_0 : i32, i32
  }
  func.func @transform_2(%arg0: i32) -> (i32, i32) {
    %c0_i32 = arith.constant 0 : i32
    %c0_i32_0 = arith.constant 0 : i32
    %c0_i32_1 = arith.constant 0 : i32
    return %c0_i32, %c0_i32_0 : i32, i32
  }
  func.func @transform_3(%arg0: i32) -> (i32, i32) {
    %c0_i32 = arith.constant 0 : i32
    %c0_i32_0 = arith.constant 0 : i32
    %c0_i32_1 = arith.constant 0 : i32
    return %c0_i32, %c0_i32_0 : i32, i32
  }
  func.func @transform_4(%arg0: i32) -> (i32, i32) {
    %c0_i32 = arith.constant 0 : i32
    %c0_i32_0 = arith.constant 0 : i32
    %c0_i32_1 = arith.constant 0 : i32
    return %c0_i32, %c0_i32_0 : i32, i32
  }
  func.func @transform_5(%arg0: i32) -> (i32, i32) {
    %c0_i32 = arith.constant 0 : i32
    %c0_i32_0 = arith.constant 0 : i32
    return %arg0, %c0_i32 : i32, i32
  }
}

</mosaic_0001>

<llo_original>
// kernel: tpu_custom_call.1
$region0: #{tpu_custom_call.1}
  #allocation0 [shape = 'u32[]', space=smem, size = 0x4, offset = 0x4, fixed_abs, tag = 'smem constant byte address 0x4 - core index']
  #allocation1 [shape = 'u32[144,128]{1,0:T(1,128)}', space=vmem, size = 0x12000, scoped, tag = 'internal scratch']
  %s0 = inlined_call_operand.vmem [shape: bf16[2,100], index: 0, kind: input, shape index: {}]
  %s1 = inlined_call_operand.vmem [shape: bf16[100,128], index: 1, kind: input, shape index: {}]
  %s2 = inlined_call_operand.vmem [shape: f32[1,128], index: 2, kind: input, shape index: {}]
  %s3 = inlined_call_operand.vmem [shape: bf16[128,2], index: 3, kind: input, shape index: {}]
  %s4 = inlined_call_operand.vmem [shape: f32[1,2], index: 4, kind: input, shape index: {}]
  %s5 = inlined_call_operand.hbm [shape: f32[2,2], index: 5, kind: output, shape index: {}]
  %s6 = sld [smem:[#allocation0]]
  $region30: #{tpu_custom_call.1} parent=0
    _
  %s8 = ssub.s32 1, %s6
  %s9 = scalar_select 0, %s8, %s6
  $region1: #{tpu_custom_call.1} parent=0
    #allocation2 [shape = 'u8[1024]{0}', space=vmem, size = 0x400, scoped, tag = 'output window, operand 0, single buffered']
    #allocation3 [shape = 's32[1]{0}', space=sflag, size = 0x4, scoped, tag = 'scoped memory for tpu_custom_call.1']
    %10 = vsyncpa [#allocation3], 0
    // Predicated region
    $region2: #{tpu_custom_call.1} parent=1 // pred_check
      _
    $region3: #{tpu_custom_call.1} parent=1 // pred_check_branch
      %12 = sbr.rel (0) target = $region5
    $region4: #{tpu_custom_call.1} parent=1 // pred_region
      _
    $region5: #{tpu_custom_call.1} parent=1 // pred_fallthru
      _
    // Predicated region
    $region6: #{tpu_custom_call.1} parent=1 // pred_check
      _
    $region7: #{tpu_custom_call.1} parent=1 // pred_check_branch
      %14 = sbr.rel (0) target = $region9
    $region8: #{tpu_custom_call.1} parent=1 // pred_region
      _
    $region9: #{tpu_custom_call.1} parent=1 // pred_fallthru
      _
    // Predicated region
    $region10: #{tpu_custom_call.1} parent=1 // pred_check
      _
    $region11: #{tpu_custom_call.1} parent=1 // pred_check_branch
      %16 = sbr.rel (0) target = $region13
    $region12: #{tpu_custom_call.1} parent=1 // pred_region
      _
    $region13: #{tpu_custom_call.1} parent=1 // pred_fallthru
      _
    // Predicated region
    $region14: #{tpu_custom_call.1} parent=1 // pred_check
      _
    $region15: #{tpu_custom_call.1} parent=1 // pred_check_branch
      %18 = sbr.rel (0) target = $region17
    $region16: #{tpu_custom_call.1} parent=1 // pred_region
      _
    $region17: #{tpu_custom_call.1} parent=1 // pred_fallthru
      _
    // Predicated region
    $region18: #{tpu_custom_call.1} parent=1 // pred_check
      _
    $region19: #{tpu_custom_call.1} parent=1 // pred_check_branch
      %20 = sbr.rel (0) target = $region21
    $region20: #{tpu_custom_call.1} parent=1 // pred_region
      _
    $region21: #{tpu_custom_call.1} parent=1 // pred_fallthru
      _
    %v22 = vld [vmem:[%s0] sm:$0x1]
    %v23 = vld [vmem:[%s1] sm:$0xf]
    %v24 = vld [vmem:[%s1 + $0x4] sm:$0xf]
    %v25 = vld [vmem:[%s1 + $0x8] sm:$0xf]
    %v26 = vld [vmem:[%s1 + $0xc] sm:$0xf]
    %v27 = vld [vmem:[%s1 + $0x10] sm:$0xf]
    %v28 = vld [vmem:[%s1 + $0x14] sm:$0xf]
    %v29 = vld [vmem:[%s1 + $0x18] sm:$0xf]
    %v30 = vld [vmem:[%s1 + $0x1c] sm:$0xf]
    %v31 = vld [vmem:[%s1 + $0x20] sm:$0xf]
    %v32 = vld [vmem:[%s1 + $0x24] sm:$0xf]
    %v33 = vld [vmem:[%s1 + $0x28] sm:$0xf]
    %v34 = vld [vmem:[%s1 + $0x2c] sm:$0xf]
    %v35 = vld [vmem:[%s1 + $0x30] sm:$0x3]
    %v36 = vld [vmem:[%s2] sm:$0x1]
    %v38 = vlaneseq
    %v39 = vshrl.u32 %v38, 7
    %v40 = vsub.s32 0, %v39
    %v41 = vrot.slane %v36, %v40
    %v56 = vunpack.c.l.b16 %v23
    %v57 = vunpack.c.l.b16 %v24
    %v58 = vunpack.c.l.b16 %v25
    %v59 = vunpack.c.l.b16 %v26
    %v60 = vunpack.c.l.b16 %v27
    %v61 = vunpack.c.l.b16 %v28
    %v62 = vunpack.c.l.b16 %v29
    %v63 = vunpack.c.l.b16 %v30
    %v64 = vunpack.c.l.b16 %v31
    %v65 = vunpack.c.l.b16 %v32
    %v66 = vunpack.c.l.b16 %v33
    %v67 = vunpack.c.l.b16 %v34
    %v68 = vunpack.c.l.b16 %v35
    %v69 = vpack.c.b16 %v57, %v56
    %v70 = vpack.c.b16 %v59, %v58
    %v71 = vpack.c.b16 %v61, %v60
    %v72 = vpack.c.b16 %v63, %v62
    %v73 = vpack.c.b16 %v65, %v64
    %v74 = vpack.c.b16 %v67, %v66
    %v75 = vpack.c.b16 %v68, %v68
    %vm82 = vcmask 818176
    %v84 = vsel %vm82, %v22, 0
    %vm86 = vcmask 1041408
    %v88 = vsel %vm86, %v75, 0
    %90 = vmatprep.subr.bf16.mxu0 0
    %91 = vmatpush1.bf16.msra.mxu0 %v69
    %92 = vmatprep.subr.bf16.mxu0 0
    %93 = vmatpush1.bf16.msra.mxu0 %v70
    %94 = vmatprep.subr.bf16.mxu0 0
    %95 = vmatpush1.bf16.msra.mxu0 %v71
    %96 = vmatprep.subr.bf16.mxu0 0
    %97 = vmatpush1.bf16.msra.mxu0 %v72
    %98 = vmatprep.subr.bf16.mxu0 0
    %99 = vmatpush1.bf16.msra.mxu0 %v73
    %100 = vmatprep.subr.bf16.mxu0 0
    %101 = vmatpush1.bf16.msra.mxu0 %v74
    %102 = vmatprep.subr.bf16.mxu0 0
    %103 = vmatpush1.bf16.msra.mxu0 %v88
    %104 = vmatprep.subr.bf16.mxu0 0
    %105 = vmatpush1.bf16.msra.mxu0 0
    %106 = vmatprep.subr.bf16.mxu0 0
    %107 = vmatpush1.bf16.msra.mxu0 0
    %108 = vmatprep.subr.bf16.mxu0 0
    %109 = vmatpush1.bf16.msra.mxu0 0
    %110 = vmatprep.subr.bf16.mxu0 0
    %111 = vmatpush1.bf16.msra.mxu0 0
    %112 = vmatprep.subr.bf16.mxu0 0
    %113 = vmatpush1.bf16.msra.mxu0 0
    %114 = vmatprep.subr.bf16.mxu0 0
    %115 = vmatpush1.bf16.msra.mxu0 0
    %116 = vmatprep.subr.bf16.mxu0 0
    %117 = vmatpush1.bf16.msra.mxu0 0
    %118 = vmatprep.subr.bf16.mxu0 0
    %119 = vmatpush1.bf16.msra.mxu0 0
    %120 = vmatprep.subr.bf16.mxu0 0
    %121 = vmatpush1.bf16.msra.mxu0 0
    %122 = vmatprep.mubr.bf16.mxu0 0
    %123 = vmatmul.mubr.bf16.gmra.mrb[0].mxu0 %v84
    %v124 = vpop.f32.mrb[0].mxu0
    %v125 = vadd.f32 %v41, %v124
    %v126 = vpop.f32.mrb[0].mxu0
    %v127 = vpop.f32.mrb[0].mxu0
    %v128 = vpop.f32.mrb[0].mxu0
    %129 = vdwg.mxu0
    %v130 = vmax.f32 %v125, 0.0
    %v131 = vpack.c.bf16 %v130, %v130
    %v132 = vld [vmem:[%s3] sm:$0xf]
    %v133 = vld [vmem:[%s3 + $0x4] sm:$0xf]
    %v134 = vld [vmem:[%s3 + $0x8] sm:$0xf]
    %v135 = vld [vmem:[%s3 + $0xc] sm:$0xf]
    %v136 = vld [vmem:[%s3 + $0x10] sm:$0xf]
    %v137 = vld [vmem:[%s3 + $0x14] sm:$0xf]
    %v138 = vld [vmem:[%s3 + $0x18] sm:$0xf]
    %v139 = vld [vmem:[%s3 + $0x1c] sm:$0xf]
    %v140 = vld [vmem:[%s3 + $0x20] sm:$0xf]
    %v141 = vld [vmem:[%s3 + $0x24] sm:$0xf]
    %v142 = vld [vmem:[%s3 + $0x28] sm:$0xf]
    %v143 = vld [vmem:[%s3 + $0x2c] sm:$0xf]
    %v144 = vld [vmem:[%s3 + $0x30] sm:$0xf]
    %v145 = vld [vmem:[%s3 + $0x34] sm:$0xf]
    %v146 = vld [vmem:[%s3 + $0x38] sm:$0xf]
    %v147 = vld [vmem:[%s3 + $0x3c] sm:$0xf]
    %v148 = vld [vmem:[%s4] sm:$0x1]
    %v150 = vlaneseq
    %v151 = vshrl.u32 %v150, 7
    %v152 = vsub.s32 0, %v151
    %v153 = vrot.slane %v148, %v152
    %v171 = vunpack.c.l.b16 %v132
    %v172 = vunpack.c.l.b16 %v133
    %v173 = vunpack.c.l.b16 %v134
    %v174 = vunpack.c.l.b16 %v135
    %v175 = vunpack.c.l.b16 %v136
    %v176 = vunpack.c.l.b16 %v137
    %v177 = vunpack.c.l.b16 %v138
    %v178 = vunpack.c.l.b16 %v139
    %v179 = vunpack.c.l.b16 %v140
    %v180 = vunpack.c.l.b16 %v141
    %v181 = vunpack.c.l.b16 %v142
    %v182 = vunpack.c.l.b16 %v143
    %v183 = vunpack.c.l.b16 %v144
    %v184 = vunpack.c.l.b16 %v145
    %v185 = vunpack.c.l.b16 %v146
    %v186 = vunpack.c.l.b16 %v147
    %v187 = vpack.c.b16 %v172, %v171
    %v188 = vpack.c.b16 %v174, %v173
    %v189 = vpack.c.b16 %v176, %v175
    %v190 = vpack.c.b16 %v178, %v177
    %v191 = vpack.c.b16 %v180, %v179
    %v192 = vpack.c.b16 %v182, %v181
    %v193 = vpack.c.b16 %v184, %v183
    %v194 = vpack.c.b16 %v186, %v185
    %203 = vmatprep.subr.bf16.mxu0 0
    %204 = vmatpush1.bf16.msra.mxu0 %v187
    %205 = vmatprep.subr.bf16.mxu0 0
    %206 = vmatpush1.bf16.msra.mxu0 %v188
    %207 = vmatprep.subr.bf16.mxu0 0
    %208 = vmatpush1.bf16.msra.mxu0 %v189
    %209 = vmatprep.subr.bf16.mxu0 0
    %210 = vmatpush1.bf16.msra.mxu0 %v190
    %211 = vmatprep.subr.bf16.mxu0 0
    %212 = vmatpush1.bf16.msra.mxu0 %v191
    %213 = vmatprep.subr.bf16.mxu0 0
    %214 = vmatpush1.bf16.msra.mxu0 %v192
    %215 = vmatprep.subr.bf16.mxu0 0
    %216 = vmatpush1.bf16.msra.mxu0 %v193
    %217 = vmatprep.subr.bf16.mxu0 0
    %218 = vmatpush1.bf16.msra.mxu0 %v194
    %219 = vmatprep.subr.bf16.mxu0 0
    %220 = vmatpush1.bf16.msra.mxu0 0
    %221 = vmatprep.subr.bf16.mxu0 0
    %222 = vmatpush1.bf16.msra.mxu0 0
    %223 = vmatprep.subr.bf16.mxu0 0
    %224 = vmatpush1.bf16.msra.mxu0 0
    %225 = vmatprep.subr.bf16.mxu0 0
    %226 = vmatpush1.bf16.msra.mxu0 0
    %227 = vmatprep.subr.bf16.mxu0 0
    %228 = vmatpush1.bf16.msra.mxu0 0
    %229 = vmatprep.subr.bf16.mxu0 0
    %230 = vmatpush1.bf16.msra.mxu0 0
    %231 = vmatprep.subr.bf16.mxu0 0
    %232 = vmatpush1.bf16.msra.mxu0 0
    %233 = vmatprep.subr.bf16.mxu0 0
    %234 = vmatpush1.bf16.msra.mxu0 0
    %235 = vmatprep.mubr.bf16.mxu0 0
    %236 = vmatmul.mubr.bf16.gmra.mrb[0].mxu0 %v131
    %v237 = vpop.f32.mrb[0].mxu0
    %v238 = vadd.f32 %v153, %v237
    %v239 = vpop.f32.mrb[0].mxu0
    %v240 = vpop.f32.mrb[0].mxu0
    %v241 = vpop.f32.mrb[0].mxu0
    %242 = vdwg.mxu0
    %vm243 = vcmask 9216
    %244 = vst.msk [vmem:[#allocation2] sm:$0x3] %vm243, %v238
    // Predicated region
    $region22: #{tpu_custom_call.1} parent=1 // pred_check
      _
    $region23: #{tpu_custom_call.1} parent=1 // pred_check_branch
      %246 = sbr.rel (0) target = $region25
    $region24: #{tpu_custom_call.1} parent=1 // pred_region
      %s248 = ssub.s32 32, 32
      %249 = vsyncadd [#allocation3], %s248
      %s251 = sshll.u32 [#allocation2], 4
      %s252 = int_to_ptr.vmem [resolvable:$true] %s251
      %254 = dma.vmem_to_hbm [thread:$0]  %s252, 32, %s5, [#allocation3]
    $region25: #{tpu_custom_call.1} parent=1 // pred_fallthru
      _
    // Predicated region
    $region26: #{tpu_custom_call.1} parent=1 // pred_check
      _
    $region27: #{tpu_custom_call.1} parent=1 // pred_check_branch
      %256 = sbr.rel (0) target = $region29
    $region28: #{tpu_custom_call.1} parent=1 // pred_region
      %257 = dma.done [#allocation3], 32
    $region29: #{tpu_custom_call.1} parent=1 // pred_fallthru
      _
    %258 = vsyncpa [#allocation3], 1

</llo_original>
